<compile_context>
chip_gen: v7x
topology: tpu7x:2x2x1
jax: 0.10.0
libtpu: 0.0.40
codegen_flags: <defaults>
</compile_context>

<pallas_src>
import jax
import jax.numpy as jnp
from jax import lax
from jax.experimental import pallas as pl
from jax.experimental.pallas import tpu as pltpu

VOCAB_SIZE = 64      # synthetic vocab (incl. 'eos', 'sos' specials)
EMBED_DIM = 128      # lane-aligned embedding width (GloVe-style vectors)
TOK_BLOCK = 8        # f32 sublane-aligned tokens per grid step


def embed_onehot_kernel(ids_ref, table_ref, out_ref):
    """One grid step handles TOK_BLOCK tokens via a one-hot MXU matmul.

    ids_ref   : VMEM (TOK_BLOCK, 1) int32     per-step slice of token ids
    table_ref : VMEM (vocab, dim)             full embedding table (resident)
    out_ref   : VMEM (TOK_BLOCK, dim)         per-step output block
    """
    vocab = table_ref.shape[0]
    ids = ids_ref[...]                                         # (TB, 1)
    col = lax.broadcasted_iota(jnp.int32, (ids.shape[0], vocab), 1)
    one_hot = (ids == col).astype(table_ref.dtype)             # (TB, vocab)
    out_ref[...] = jnp.dot(
        one_hot, table_ref[...], preferred_element_type=jnp.float32
    ).astype(out_ref.dtype)


def embed_lookup(token_ids: jax.Array, table: jax.Array,
                 tok_block: int = TOK_BLOCK) -> jax.Array:
    """Pallas embedding gather: (seq_len,) int32 ids -> (seq_len, dim)."""
    seq_len = int(token_ids.shape[0])
    vocab, dim = table.shape
    if seq_len == 0:                       # guard: empty sentence
        return jnp.zeros((0, dim), table.dtype)

    # Clamp (no OOB reads) and pad the sequence to a multiple of tok_block.
    ids = jnp.clip(token_ids.astype(jnp.int32), 0, vocab - 1)
    pad = (-seq_len) % tok_block
    if pad:
        ids = jnp.concatenate([ids, jnp.zeros((pad,), jnp.int32)])
    padded = seq_len + pad
    ids2d = ids.reshape(padded, 1)

    grid = (padded // tok_block,)
    itemsize = jnp.dtype(table.dtype).itemsize
    cost = pl.CostEstimate(
        flops=2 * padded * vocab * dim,
        transcendentals=0,
        bytes_accessed=(padded * 4                 # ids
                        + vocab * dim * itemsize   # table DMA
                        + padded * dim * itemsize  # output
                        ),
    )

    out = pl.pallas_call(
        embed_onehot_kernel,
        out_shape=jax.ShapeDtypeStruct((padded, dim), table.dtype),
        grid_spec=pltpu.PrefetchScalarGridSpec(
            num_scalar_prefetch=0,
            grid=grid,
            in_specs=[
                # Per-step slice of token ids.
                pl.BlockSpec((tok_block, 1), lambda i: (i, 0)),
                # Full table kept resident in VMEM (tiny at toy sizes).
                pl.BlockSpec((vocab, dim), lambda i: (0, 0)),
            ],
            # Independent per-step output block -> lane-dense, unmasked stores.
            out_specs=pl.BlockSpec((tok_block, dim), lambda i: (i, 0)),
        ),
        compiler_params=pltpu.CompilerParams(
            dimension_semantics=("parallel",)),
        cost_estimate=cost,
    )(ids2d, table)
    return out[:seq_len]


class EmbedGloveJax:
    """JAX/Pallas analogue of the PyTorch EmbedGlove module."""

    SPECIALS = ("eos", "sos")   # stored lowercase: forward() lowercases tokens

    def __init__(self, corpus_words, key, embed_dim=EMBED_DIM):
        # Deterministic synthetic "GloVe" vectors instead of loading a file.
        uniq = list(self.SPECIALS) + sorted(
            {w.lower() for w in corpus_words} - set(self.SPECIALS))
        self.stoi = {w: i for i, w in enumerate(uniq)}
        self.itos = uniq
        vocab_size = max(VOCAB_SIZE, len(uniq))
        vocab_size = ((vocab_size + 7) // 8) * 8   # sublane-aligned table rows
        self.vectors = jax.random.normal(
            key, (vocab_size, embed_dim), dtype=jnp.float32)

    def generate_ids(self, sentence: str) -> jax.Array:
        toks = sentence.lower().split()
        return jnp.asarray([self.stoi[t] for t in toks], dtype=jnp.int32)

    def wordtoi(self, word: str) -> int:
        return self.stoi[word.lower()]

    def itoword(self, i: int) -> str:
        return self.itos[i]

    def forward(self, sentence: str) -> jax.Array:
        ids = self.generate_ids(sentence)
        return embed_lookup(ids, self.vectors)


if __name__ == "__main__":
    key = jax.random.PRNGKey(0)

    corpus = ("the quick brown fox jumps over the lazy dog "
              "a small test corpus with a few repeated words").split()
    module = EmbedGloveJax(corpus, key)

    sentence = "SOS the quick brown fox jumps over dog"   # 8 tokens (seq=8)

    out = module.forward(sentence)
    out = jax.block_until_ready(out)

    # Reference check against a plain gather.
    ids = module.generate_ids(sentence)
    ref = jnp.take(module.vectors, ids, axis=0)
    assert out.shape == (len(sentence.split()), EMBED_DIM), out.shape
    assert jnp.allclose(out, ref), "Pallas gather mismatch vs jnp.take"

    print("KERNEL_OK")
</pallas_src>

<mosaic_0001>
module attributes {stable_mosaic.version = 11 : i64} {
  func.func @embed_onehot_kernel(%arg0: i32, %arg1: memref<8x1xi32, #tpu.memory_space<vmem>>, %arg2: memref<64x128xf32, #tpu.memory_space<vmem>>, %arg3: memref<8x128xf32, #tpu.memory_space<vmem>>) attributes {dimension_semantics = [#tpu.dimension_semantics<parallel>], iteration_bounds = array<i64: 1>, scalar_prefetch = 0 : i64, scratch_operands = 0 : i64, tpu.core_type = #tpu.core_type<tc>, window_params = [{transform_indices = @transform_0, window_bounds = array<i64: 8, 1>}, {pipeline_mode = #tpu.pipeline_mode<synchronous>, transform_indices = @transform_1, window_bounds = array<i64: 64, 128>}, {transform_indices = @transform_2, window_bounds = array<i64: 8, 128>}]} {
    %c0 = arith.constant 0 : index
    %c0_0 = arith.constant 0 : index
    %0 = vector.load %arg1[%c0, %c0_0] : memref<8x1xi32, #tpu.memory_space<vmem>>, vector<8x1xi32>
    %1 = tpu.iota {dimensions = array<i32: 1>} : vector<8x64xi32>
    %2 = vector.broadcast %0 : vector<8x1xi32> to vector<8x64xi32>
    %3 = arith.cmpi eq, %2, %1 : vector<8x64xi32>
    %4 = arith.extui %3 : vector<8x64xi1> to vector<8x64xi32>
    %5 = arith.sitofp %4 : vector<8x64xi32> to vector<8x64xf32>
    %c0_1 = arith.constant 0 : index
    %c0_2 = arith.constant 0 : index
    %6 = vector.load %arg2[%c0_1, %c0_2] : memref<64x128xf32, #tpu.memory_space<vmem>>, vector<64x128xf32>
    %cst = arith.constant dense<0.000000e+00> : vector<8x128xf32>
    %7 = tpu.matmul %5, %6, %cst {dimension_numbers = #tpu.dot_dimension_numbers<[1], [0], [0], [1], [0, 0, 1, 1], [], []>} : vector<8x64xf32>, vector<64x128xf32>, vector<8x128xf32> -> vector<8x128xf32>
    %c0_3 = arith.constant 0 : index
    %c0_4 = arith.constant 0 : index
    %8 = vector.load %arg3[%c0_3, %c0_4] : memref<8x128xf32, #tpu.memory_space<vmem>>, vector<8x128xf32>
    tpu.vector_store %arg3[%c0_3, %c0_4], %7 {strides = array<i32>} : memref<8x128xf32, #tpu.memory_space<vmem>>, vector<8x128xf32>,
    return
  }
  func.func @transform_0(%arg0: i32) -> (i32, i32) {
    %c0_i32 = arith.constant 0 : i32
    %c0_i32_0 = arith.constant 0 : i32
    return %arg0, %c0_i32 : i32, i32
  }
  func.func @transform_1(%arg0: i32) -> (i32, i32) {
    %c0_i32 = arith.constant 0 : i32
    %c0_i32_0 = arith.constant 0 : i32
    %c0_i32_1 = arith.constant 0 : i32
    return %c0_i32, %c0_i32_0 : i32, i32
  }
  func.func @transform_2(%arg0: i32) -> (i32, i32) {
    %c0_i32 = arith.constant 0 : i32
    %c0_i32_0 = arith.constant 0 : i32
    return %arg0, %c0_i32 : i32, i32
  }
}

</mosaic_0001>

<llo_original>
// kernel: tpu_custom_call.1
$region0: #{tpu_custom_call.1}
  #allocation0 [shape = 'u32[]', space=smem, size = 0x4, offset = 0x4, fixed_abs, tag = 'smem constant byte address 0x4 - core index']
  #allocation1 [shape = 'u32[144,128]{1,0:T(1,128)}', space=vmem, size = 0x12000, scoped, tag = 'internal scratch']
  %s0 = inlined_call_operand.vmem [shape: s32[8,1], index: 0, kind: input, shape index: {}]
  %s1 = inlined_call_operand.hbm [shape: f32[64,128], index: 1, kind: input, shape index: {}]
  %s2 = inlined_call_operand.hbm [shape: f32[8,128], index: 2, kind: output, shape index: {}]
  %s3 = sld [smem:[#allocation0]]
  $region22: #{tpu_custom_call.1} parent=0
    _
  %s5 = ssub.s32 1, %s3
  %s6 = scalar_select 0, %s5, %s3
  $region1: #{tpu_custom_call.1} parent=0
    #allocation2 [shape = 'u8[32768]{0}', space=vmem, size = 0x8000, scoped, tag = 'input window, operand 1, single buffered']
    #allocation3 [shape = 's32[1]{0}', space=sflag, size = 0x4, scoped, tag = 'scoped memory for tpu_custom_call.1']
    #allocation4 [shape = 's32[1]{0}', space=sflag, size = 0x4, scoped, tag = 'scoped memory for tpu_custom_call.1']
    #allocation5 [shape = 'u8[4096]{0}', space=vmem, size = 0x1000, scoped, tag = 'output window, operand 0, single buffered']
    %7 = vsyncpa [#allocation3], 0
    %8 = vsyncpa [#allocation4], 0
    // Predicated region
    $region2: #{tpu_custom_call.1} parent=1 // pred_check
      _
    $region3: #{tpu_custom_call.1} parent=1 // pred_check_branch
      %10 = sbr.rel (0) target = $region5
    $region4: #{tpu_custom_call.1} parent=1 // pred_region
      _
    $region5: #{tpu_custom_call.1} parent=1 // pred_fallthru
      _
    // Predicated region
    $region6: #{tpu_custom_call.1} parent=1 // pred_check
      _
    $region7: #{tpu_custom_call.1} parent=1 // pred_check_branch
      %12 = sbr.rel (0) target = $region9
    $region8: #{tpu_custom_call.1} parent=1 // pred_region
      %s14 = ssub.s32 1024, 1024
      %15 = vsyncadd [#allocation3], %s14
      %s16 = sshll.u32 [#allocation2], 4
      %s17 = int_to_ptr.vmem [resolvable:$true] %s16
      %22 = dma.hbm_to_vmem [thread:$0]  %s1, 1024, %s17, [#allocation3], 128, 128, 8
    $region9: #{tpu_custom_call.1} parent=1 // pred_fallthru
      _
    // Predicated region
    $region10: #{tpu_custom_call.1} parent=1 // pred_check
      _
    $region11: #{tpu_custom_call.1} parent=1 // pred_check_branch
      %24 = sbr.rel (0) target = $region13
    $region12: #{tpu_custom_call.1} parent=1 // pred_region
      %25 = dma.done [#allocation3], 1024
    $region13: #{tpu_custom_call.1} parent=1 // pred_fallthru
      _
    %v26 = vld [vmem:[%s0] sm:$0xff]
    %v27 = vlaneseq
    %v28 = vand.u32 %v27, 127
    %29 = vset.pattern.permute.xlu0 0
    %30 = vperm.xlu0 %29, %v26
    %v31 = vpop.permute.xlu0 %30
    %vm32 = vcmp.eq.s32.totalorder %v31, %v28
    %v33 = vsel %vm32, 1, 0
    %v34 = vcvt.s32.f32 %v33
    %v35 = vld [vmem:[#allocation2] sm:$0xff]
    %v36 = vld [vmem:[#allocation2 + $0x8] sm:$0xff]
    %v37 = vld [vmem:[#allocation2 + $0x10] sm:$0xff]
    %v38 = vld [vmem:[#allocation2 + $0x18] sm:$0xff]
    %v39 = vld [vmem:[#allocation2 + $0x20] sm:$0xff]
    %v40 = vld [vmem:[#allocation2 + $0x28] sm:$0xff]
    %v41 = vld [vmem:[#allocation2 + $0x30] sm:$0xff]
    %v42 = vld [vmem:[#allocation2 + $0x38] sm:$0xff]
    %vm43 = vcmask 523264
    %v45 = vsel %vm43, %v34, 0
    %47 = vmatprep.subr.mxu0 0.0
    %48 = vmatpush1.msra.mxu0 %v35
    %49 = vmatprep.subr.mxu0 0.0
    %50 = vmatpush1.msra.mxu0 %v36
    %51 = vmatprep.subr.mxu0 0.0
    %52 = vmatpush1.msra.mxu0 %v37
    %53 = vmatprep.subr.mxu0 0.0
    %54 = vmatpush1.msra.mxu0 %v38
    %55 = vmatprep.subr.mxu0 0.0
    %56 = vmatpush1.msra.mxu0 %v39
    %57 = vmatprep.subr.mxu0 0.0
    %58 = vmatpush1.msra.mxu0 %v40
    %59 = vmatprep.subr.mxu0 0.0
    %60 = vmatpush1.msra.mxu0 %v41
    %61 = vmatprep.subr.mxu0 0.0
    %62 = vmatpush1.msra.mxu0 %v42
    %63 = vmatprep.subr.mxu0 0.0
    %64 = vmatpush1.msra.mxu0 0.0
    %65 = vmatprep.subr.mxu0 0.0
    %66 = vmatpush1.msra.mxu0 0.0
    %67 = vmatprep.subr.mxu0 0.0
    %68 = vmatpush1.msra.mxu0 0.0
    %69 = vmatprep.subr.mxu0 0.0
    %70 = vmatpush1.msra.mxu0 0.0
    %71 = vmatprep.subr.mxu0 0.0
    %72 = vmatpush1.msra.mxu0 0.0
    %73 = vmatprep.subr.mxu0 0.0
    %74 = vmatpush1.msra.mxu0 0.0
    %75 = vmatprep.subr.mxu0 0.0
    %76 = vmatpush1.msra.mxu0 0.0
    %77 = vmatprep.subr.mxu0 0.0
    %78 = vmatpush1.msra.mxu0 0.0
    %79 = vmatprep.subr.mxu0 0.0
    %80 = vmatpush1.msra.mxu0 0.0
    %81 = vmatprep.subr.mxu0 0.0
    %82 = vmatpush1.msra.mxu0 0.0
    %83 = vmatprep.subr.mxu0 0.0
    %84 = vmatpush1.msra.mxu0 0.0
    %85 = vmatprep.subr.mxu0 0.0
    %86 = vmatpush1.msra.mxu0 0.0
    %87 = vmatprep.subr.mxu0 0.0
    %88 = vmatpush1.msra.mxu0 0.0
    %89 = vmatprep.subr.mxu0 0.0
    %90 = vmatpush1.msra.mxu0 0.0
    %91 = vmatprep.subr.mxu0 0.0
    %92 = vmatpush1.msra.mxu0 0.0
    %93 = vmatprep.subr.mxu0 0.0
    %94 = vmatpush1.msra.mxu0 0.0
    %95 = vmatprep.subr.mxu0 0.0
    %96 = vmatpush1.msra.mxu0 0.0
    %97 = vmatprep.subr.mxu0 0.0
    %98 = vmatpush1.msra.mxu0 0.0
    %99 = vmatprep.subr.mxu0 0.0
    %100 = vmatpush1.msra.mxu0 0.0
    %101 = vmatprep.subr.mxu0 0.0
    %102 = vmatpush1.msra.mxu0 0.0
    %103 = vmatprep.subr.mxu0 0.0
    %104 = vmatpush1.msra.mxu0 0.0
    %105 = vmatprep.subr.mxu0 0.0
    %106 = vmatpush1.msra.mxu0 0.0
    %107 = vmatprep.subr.mxu0 0.0
    %108 = vmatpush1.msra.mxu0 0.0
    %109 = vmatprep.subr.mxu0 0.0
    %110 = vmatpush1.msra.mxu0 0.0
    %111 = vmatprep.mubr.f32.mxu0 0.0
    %112 = vmatmul.mubr.f32.gmra.mrb[0].mxu0 %v45
    %v113 = vpop.f32.mrb[0].mxu0
    %v114 = vadd.f32 0.0, %v113
    %v115 = vpop.f32.mrb[0].mxu0
    %116 = vdwg.mxu0
    %117 = vst [vmem:[#allocation5] sm:$0xff] %v114
    // Predicated region
    $region14: #{tpu_custom_call.1} parent=1 // pred_check
      _
    $region15: #{tpu_custom_call.1} parent=1 // pred_check_branch
      %119 = sbr.rel (0) target = $region17
    $region16: #{tpu_custom_call.1} parent=1 // pred_region
      %s121 = ssub.s32 128, 128
      %122 = vsyncadd [#allocation4], %s121
      %s124 = sshll.u32 [#allocation5], 4
      %s125 = int_to_ptr.vmem [resolvable:$true] %s124
      %127 = dma.vmem_to_hbm [thread:$0]  %s125, 128, %s2, [#allocation4]
    $region17: #{tpu_custom_call.1} parent=1 // pred_fallthru
      _
    // Predicated region
    $region18: #{tpu_custom_call.1} parent=1 // pred_check
      _
    $region19: #{tpu_custom_call.1} parent=1 // pred_check_branch
      %129 = sbr.rel (0) target = $region21
    $region20: #{tpu_custom_call.1} parent=1 // pred_region
      %130 = dma.done [#allocation4], 128
    $region21: #{tpu_custom_call.1} parent=1 // pred_fallthru
      _
    %131 = vsyncpa [#allocation3], 1
    %132 = vsyncpa [#allocation4], 1

</llo_original>
